<compile_context>
chip_gen: v6e
topology: v6e:2x2x1
jax: 0.10.0
libtpu: 0.0.40
codegen_flags: <defaults>
</compile_context>

<pallas_src>
import functools

import jax
import jax.numpy as jnp
import numpy as np
from jax.experimental import pallas as pl
from jax.experimental.pallas import tpu as pltpu


def _t2t_tile_kernel(learn_tile_ref, fix_tile_ref, learn_full_ref, fix_full_ref,
                     out_ref, *, inv_temp, loss_weight, fold_scale):
    learn_t = learn_tile_ref[...]          # (TM, D)  native dtype
    fix_t = fix_tile_ref[...]              # (TM, D)
    learn_f = learn_full_ref[...]          # (N, D)   resident
    fix_f = fix_full_ref[...]              # (N, D)   resident

    dn = (((1,), (1,)), ((), ()))          # contract on the embedding dim

    if fold_scale:
        # f32 inputs: fold 1/temperature into the small (TM, D) operands so we
        # never scale an (TM, N) tile.
        learn_mm = learn_t * inv_temp
        fix_mm = fix_t * inv_temp
        sim_rows = jax.lax.dot_general(learn_mm, fix_f, dn,
                                       preferred_element_type=jnp.float32)
        simT_rows = jax.lax.dot_general(fix_mm, learn_f, dn,
                                        preferred_element_type=jnp.float32)
        diag = jnp.sum(learn_mm * fix_t.astype(jnp.float32),
                       axis=1, keepdims=True)                       # (TM, 1)
    else:
        # low-precision inputs: feed the MXU natively (f32 accumulation) and
        # apply the temperature on the f32 results.
        sim_rows = jax.lax.dot_general(learn_t, fix_f, dn,
                                       preferred_element_type=jnp.float32) * inv_temp
        simT_rows = jax.lax.dot_general(fix_t, learn_f, dn,
                                        preferred_element_type=jnp.float32) * inv_temp
        diag = jnp.sum(learn_t.astype(jnp.float32) * fix_t.astype(jnp.float32),
                       axis=1, keepdims=True) * inv_temp            # (TM, 1)

    # loss_1 contribution (rows of sim): logsumexp along lanes.
    m1 = jnp.max(sim_rows, axis=1, keepdims=True)                   # (TM, 1)
    lse1 = m1 + jnp.log(jnp.sum(jnp.exp(sim_rows - m1), axis=1, keepdims=True))
    # loss_2 contribution (rows of sim.T == columns of sim): also along lanes.
    m2 = jnp.max(simT_rows, axis=1, keepdims=True)
    lse2 = m2 + jnp.log(jnp.sum(jnp.exp(simT_rows - m2), axis=1, keepdims=True))

    out_ref[...] = (loss_weight * 0.5) * ((lse1 - diag) + (lse2 - diag))


def _pick_row_tile(n):
    for t in (512, 256, 128, 64, 32, 16, 8):
        if n % t == 0:
            return t
    return n  # single full-height block (block dim == full dim is always legal)


def t2t_contrastive_loss(learn, fix, *, temperature=0.07, loss_weight=1.0,
                         reduction="mean"):
    """Pallas implementation of Text2TextContrastiveLoss.forward."""
    assert learn.ndim == 2 and fix.ndim == 2
    assert learn.shape == fix.shape
    assert reduction in ("none", "mean", "sum")
    n, d = learn.shape

    tm = _pick_row_tile(n)
    num_tiles = n // tm
    fold_scale = jnp.dtype(learn.dtype) == jnp.float32

    kernel = functools.partial(
        _t2t_tile_kernel,
        inv_temp=1.0 / temperature,
        loss_weight=float(loss_weight),
        fold_scale=bool(fold_scale),
    )

    # Per-step VMEM footprint estimate -> explicit scoped-VMEM limit,
    # capped at 64 MiB so the same config fits v7x physical VMEM.
    itemsize = jnp.dtype(learn.dtype).itemsize
    est_bytes = (2 * n * d * itemsize        # resident learn / fix copies
                 + 4 * tm * d * itemsize     # double-buffered row tiles
                 + 6 * tm * n * 4            # two (TM, N) f32 logit tiles + temps
                 + 4 * tm * 4)
    vmem_limit = int(min(max(4 * est_bytes, 32 * 2 ** 20), 64 * 2 ** 20))

    per_class = pl.pallas_call(
        kernel,
        out_shape=jax.ShapeDtypeStruct((n, 1), jnp.float32),
        grid=(num_tiles,),
        in_specs=[
            pl.BlockSpec((tm, d), lambda i: (i, 0)),   # learn row tile
            pl.BlockSpec((tm, d), lambda i: (i, 0)),   # fix row tile
            pl.BlockSpec((n, d), lambda i: (0, 0)),    # learn, resident
            pl.BlockSpec((n, d), lambda i: (0, 0)),    # fix, resident
        ],
        out_specs=pl.BlockSpec((tm, 1), lambda i: (i, 0)),
        compiler_params=pltpu.CompilerParams(
            dimension_semantics=("parallel",),
            vmem_limit_bytes=vmem_limit),
    )(learn, fix, learn, fix)

    per_class = per_class[:, 0]                       # (N,) weighted per-class loss
    if reduction == "none":
        return per_class
    if reduction == "mean":
        return jnp.mean(per_class)
    return jnp.sum(per_class)


# ----------------------------- reference & demo ------------------------------

def _reference_per_class(learn, fix, temperature=0.07, loss_weight=1.0):
    sim = (learn.astype(jnp.float32) @ fix.astype(jnp.float32).T) / temperature
    lse_row = jax.scipy.special.logsumexp(sim, axis=1)
    lse_col = jax.scipy.special.logsumexp(sim, axis=0)
    diag = jnp.diagonal(sim)
    return loss_weight * 0.5 * ((lse_row - diag) + (lse_col - diag))


def _l2_normalize(x, axis=-1, eps=1e-12):
    norm = jnp.sqrt(jnp.sum(x * x, axis=axis, keepdims=True))
    return x / jnp.maximum(norm, eps)


if __name__ == "__main__":
    # Synthetic, deterministic stand-ins for:
    #   - text_embeddings_learn_normalize (learned, already normalized)
    #   - text_embeddings_fix (would be torch.load(...); here random + F.normalize)
    num_classes, embed_dim = 8, 32
    key = jax.random.PRNGKey(0)
    k_learn, k_fix = jax.random.split(key)

    learn_norm = _l2_normalize(
        jax.random.normal(k_learn, (num_classes, embed_dim), jnp.float32))
    fix_norm = _l2_normalize(
        jax.random.normal(k_fix, (num_classes, embed_dim), jnp.float32))

    temperature, loss_weight = 0.07, 1.0

    loss_mean = jax.block_until_ready(
        t2t_contrastive_loss(learn_norm, fix_norm, temperature=temperature,
                             loss_weight=loss_weight, reduction="mean"))
    loss_sum = jax.block_until_ready(
        t2t_contrastive_loss(learn_norm, fix_norm, temperature=temperature,
                             loss_weight=loss_weight, reduction="sum"))
    loss_none = jax.block_until_ready(
        t2t_contrastive_loss(learn_norm, fix_norm, temperature=temperature,
                             loss_weight=loss_weight, reduction="none"))

    ref_pc = jax.block_until_ready(
        _reference_per_class(learn_norm, fix_norm, temperature, loss_weight))

    np.testing.assert_allclose(np.asarray(loss_none), np.asarray(ref_pc),
                               rtol=1e-5, atol=1e-5)
    np.testing.assert_allclose(np.asarray(loss_mean), float(np.mean(ref_pc)),
                               rtol=1e-5, atol=1e-5)
    np.testing.assert_allclose(np.asarray(loss_sum), float(np.sum(ref_pc)),
                               rtol=1e-5, atol=1e-5)
    print("KERNEL_OK")
</pallas_src>

<mosaic_0001>
module attributes {stable_mosaic.version = 11 : i64} {
  func.func @_t2t_tile_kernel(%arg0: i32, %arg1: memref<8x32xf32, #tpu.memory_space<vmem>>, %arg2: memref<8x32xf32, #tpu.memory_space<vmem>>, %arg3: memref<8x32xf32, #tpu.memory_space<vmem>>, %arg4: memref<8x32xf32, #tpu.memory_space<vmem>>, %arg5: memref<8x1xf32, #tpu.memory_space<vmem>>) attributes {dimension_semantics = [#tpu.dimension_semantics<parallel>], iteration_bounds = array<i64: 1>, scalar_prefetch = 0 : i64, scratch_operands = 0 : i64, tpu.core_type = #tpu.core_type<tc>, window_params = [{transform_indices = @transform_0, window_bounds = array<i64: 8, 32>}, {transform_indices = @transform_1, window_bounds = array<i64: 8, 32>}, {pipeline_mode = #tpu.pipeline_mode<synchronous>, transform_indices = @transform_2, window_bounds = array<i64: 8, 32>}, {pipeline_mode = #tpu.pipeline_mode<synchronous>, transform_indices = @transform_3, window_bounds = array<i64: 8, 32>}, {transform_indices = @transform_4, window_bounds = array<i64: 8, 1>}]} {
    %c0 = arith.constant 0 : index
    %c0_0 = arith.constant 0 : index
    %0 = vector.load %arg1[%c0, %c0_0] : memref<8x32xf32, #tpu.memory_space<vmem>>, vector<8x32xf32>
    %c0_1 = arith.constant 0 : index
    %c0_2 = arith.constant 0 : index
    %1 = vector.load %arg2[%c0_1, %c0_2] : memref<8x32xf32, #tpu.memory_space<vmem>>, vector<8x32xf32>
    %c0_3 = arith.constant 0 : index
    %c0_4 = arith.constant 0 : index
    %2 = vector.load %arg3[%c0_3, %c0_4] : memref<8x32xf32, #tpu.memory_space<vmem>>, vector<8x32xf32>
    %c0_5 = arith.constant 0 : index
    %c0_6 = arith.constant 0 : index
    %3 = vector.load %arg4[%c0_5, %c0_6] : memref<8x32xf32, #tpu.memory_space<vmem>>, vector<8x32xf32>
    %cst = arith.constant 14.2857141 : f32
    %4 = vector.broadcast %cst : f32 to vector<8x32xf32>
    %5 = arith.mulf %0, %4 : vector<8x32xf32>
    %cst_7 = arith.constant 14.2857141 : f32
    %6 = vector.broadcast %cst_7 : f32 to vector<8x32xf32>
    %7 = arith.mulf %1, %6 : vector<8x32xf32>
    %cst_8 = arith.constant dense<0.000000e+00> : vector<8x8xf32>
    %8 = tpu.matmul %5, %3, %cst_8 {dimension_numbers = #tpu.dot_dimension_numbers<[1], [1], [0], [0], [0, 0, 1, 0], [], []>} : vector<8x32xf32>, vector<8x32xf32>, vector<8x8xf32> -> vector<8x8xf32>
    %cst_9 = arith.constant dense<0.000000e+00> : vector<8x8xf32>
    %9 = tpu.matmul %7, %2, %cst_9 {dimension_numbers = #tpu.dot_dimension_numbers<[1], [1], [0], [0], [0, 0, 1, 0], [], []>} : vector<8x32xf32>, vector<8x32xf32>, vector<8x8xf32> -> vector<8x8xf32>
    %10 = arith.mulf %5, %1 : vector<8x32xf32>
    %cst_10 = arith.constant dense<0.000000e+00> : vector<8xf32>
    %11 = vector.multi_reduction <add>, %10, %cst_10 [1] : vector<8x32xf32> to vector<8xf32>
    %12 = vector.shape_cast %11 : vector<8xf32> to vector<8x1xf32>
    %cst_11 = arith.constant dense<0xFF800000> : vector<8xf32>
    %13 = vector.multi_reduction <maximumf>, %8, %cst_11 [1] : vector<8x8xf32> to vector<8xf32>
    %14 = vector.shape_cast %13 : vector<8xf32> to vector<8x1xf32>
    %15 = vector.broadcast %14 : vector<8x1xf32> to vector<8x8xf32>
    %16 = arith.subf %8, %15 : vector<8x8xf32>
    %17 = math.exp %16 : vector<8x8xf32>
    %cst_12 = arith.constant dense<0.000000e+00> : vector<8xf32>
    %18 = vector.multi_reduction <add>, %17, %cst_12 [1] : vector<8x8xf32> to vector<8xf32>
    %19 = vector.shape_cast %18 : vector<8xf32> to vector<8x1xf32>
    %20 = math.log %19 : vector<8x1xf32>
    %21 = arith.addf %14, %20 : vector<8x1xf32>
    %cst_13 = arith.constant dense<0xFF800000> : vector<8xf32>
    %22 = vector.multi_reduction <maximumf>, %9, %cst_13 [1] : vector<8x8xf32> to vector<8xf32>
    %23 = vector.shape_cast %22 : vector<8xf32> to vector<8x1xf32>
    %24 = vector.broadcast %23 : vector<8x1xf32> to vector<8x8xf32>
    %25 = arith.subf %9, %24 : vector<8x8xf32>
    %26 = math.exp %25 : vector<8x8xf32>
    %cst_14 = arith.constant dense<0.000000e+00> : vector<8xf32>
    %27 = vector.multi_reduction <add>, %26, %cst_14 [1] : vector<8x8xf32> to vector<8xf32>
    %28 = vector.shape_cast %27 : vector<8xf32> to vector<8x1xf32>
    %29 = math.log %28 : vector<8x1xf32>
    %30 = arith.addf %23, %29 : vector<8x1xf32>
    %31 = arith.subf %21, %12 : vector<8x1xf32>
    %32 = arith.subf %30, %12 : vector<8x1xf32>
    %33 = arith.addf %31, %32 : vector<8x1xf32>
    %cst_15 = arith.constant 5.000000e-01 : f32
    %34 = vector.broadcast %cst_15 : f32 to vector<8x1xf32>
    %35 = arith.mulf %34, %33 : vector<8x1xf32>
    %c0_16 = arith.constant 0 : index
    %c0_17 = arith.constant 0 : index
    %36 = vector.load %arg5[%c0_16, %c0_17] : memref<8x1xf32, #tpu.memory_space<vmem>>, vector<8x1xf32>
    tpu.vector_store %arg5[%c0_16, %c0_17], %35 {strides = array<i32>} : memref<8x1xf32, #tpu.memory_space<vmem>>, vector<8x1xf32>,
    return
  }
  func.func @transform_0(%arg0: i32) -> (i32, i32) {
    %c0_i32 = arith.constant 0 : i32
    %c0_i32_0 = arith.constant 0 : i32
    return %arg0, %c0_i32 : i32, i32
  }
  func.func @transform_1(%arg0: i32) -> (i32, i32) {
    %c0_i32 = arith.constant 0 : i32
    %c0_i32_0 = arith.constant 0 : i32
    return %arg0, %c0_i32 : i32, i32
  }
  func.func @transform_2(%arg0: i32) -> (i32, i32) {
    %c0_i32 = arith.constant 0 : i32
    %c0_i32_0 = arith.constant 0 : i32
    %c0_i32_1 = arith.constant 0 : i32
    return %c0_i32, %c0_i32_0 : i32, i32
  }
  func.func @transform_3(%arg0: i32) -> (i32, i32) {
    %c0_i32 = arith.constant 0 : i32
    %c0_i32_0 = arith.constant 0 : i32
    %c0_i32_1 = arith.constant 0 : i32
    return %c0_i32, %c0_i32_0 : i32, i32
  }
  func.func @transform_4(%arg0: i32) -> (i32, i32) {
    %c0_i32 = arith.constant 0 : i32
    %c0_i32_0 = arith.constant 0 : i32
    return %arg0, %c0_i32 : i32, i32
  }
}

</mosaic_0001>

<llo_original>
// kernel: tpu_custom_call.1
$region0: #{tpu_custom_call.1}
  #allocation0 [shape = 'u32[]', space=smem, size = 0x4, offset = 0x4, fixed_abs, tag = 'smem constant byte address 0x4 - core index']
  #allocation1 [shape = 'u32[144,128]{1,0:T(1,128)}', space=vmem, size = 0x12000, scoped, tag = 'internal scratch']
  %s0 = inlined_call_operand.hbm [shape: f32[8,32], index: 0, kind: input, shape index: {}]
  %s1 = inlined_call_operand.hbm [shape: f32[8,32], index: 1, kind: input, shape index: {}]
  %s2 = inlined_call_operand.hbm [shape: f32[8,32], index: 2, kind: input, shape index: {}]
  %s3 = inlined_call_operand.hbm [shape: f32[8,32], index: 3, kind: input, shape index: {}]
  %s4 = inlined_call_operand.vmem [shape: f32[8,1], index: 4, kind: output, shape index: {}]
  %s5 = sld [smem:[#allocation0]]
  $region42: #{tpu_custom_call.1} parent=0
    _
  %s7 = ssub.s32 1, %s5
  %s8 = scalar_select 0, %s7, %s5
  $region1: #{tpu_custom_call.1} parent=0
    #allocation2 [shape = 'u8[4096]{0}', space=vmem, size = 0x1000, scoped, tag = 'input window, operand 0, single buffered']
    #allocation3 [shape = 's32[1]{0}', space=sflag, size = 0x4, scoped, tag = 'scoped memory for tpu_custom_call.1']
    #allocation4 [shape = 'u8[4096]{0}', space=vmem, size = 0x1000, scoped, tag = 'input window, operand 1, single buffered']
    #allocation5 [shape = 's32[1]{0}', space=sflag, size = 0x4, scoped, tag = 'scoped memory for tpu_custom_call.1']
    #allocation6 [shape = 'u8[4096]{0}', space=vmem, size = 0x1000, scoped, tag = 'input window, operand 2, single buffered']
    #allocation7 [shape = 'u8[4096]{0}', space=vmem, size = 0x1000, scoped, tag = 'input window, operand 3, single buffered']
    #allocation8 [shape = 's32[1]{0}', space=sflag, size = 0x4, scoped, tag = 'scoped memory for tpu_custom_call.1']
    %9 = vsyncpa [#allocation3], 0
    %10 = vsyncpa [#allocation5], 0
    %11 = vsyncpa [#allocation8], 0
    // Predicated region
    $region2: #{tpu_custom_call.1} parent=1 // pred_check
      _
    $region3: #{tpu_custom_call.1} parent=1 // pred_check_branch
      %13 = sbr.rel (0) target = $region5
    $region4: #{tpu_custom_call.1} parent=1 // pred_region
      %s15 = ssub.s32 128, 128
      %16 = vsyncadd [#allocation3], %s15
      %s18 = sshll.u32 [#allocation2], 4
      %s19 = int_to_ptr.vmem [resolvable:$true] %s18
      %21 = dma.hbm_to_vmem [thread:$0]  %s0, 128, %s19, [#allocation3]
    $region5: #{tpu_custom_call.1} parent=1 // pred_fallthru
      _
    // Predicated region
    $region6: #{tpu_custom_call.1} parent=1 // pred_check
      _
    $region7: #{tpu_custom_call.1} parent=1 // pred_check_branch
      %23 = sbr.rel (0) target = $region9
    $region8: #{tpu_custom_call.1} parent=1 // pred_region
      %s25 = ssub.s32 128, 128
      %26 = vsyncadd [#allocation5], %s25
      %s28 = sshll.u32 [#allocation4], 4
      %s29 = int_to_ptr.vmem [resolvable:$true] %s28
      %31 = dma.hbm_to_vmem [thread:$0]  %s1, 128, %s29, [#allocation5]
    $region9: #{tpu_custom_call.1} parent=1 // pred_fallthru
      _
    // Predicated region
    $region10: #{tpu_custom_call.1} parent=1 // pred_check
      _
    $region11: #{tpu_custom_call.1} parent=1 // pred_check_branch
      %33 = sbr.rel (0) target = $region13
    $region12: #{tpu_custom_call.1} parent=1 // pred_region
      %s35 = ssub.s32 128, 128
      %36 = vsyncadd [#allocation5], %s35
      %s38 = sshll.u32 [#allocation6], 4
      %s39 = int_to_ptr.vmem [resolvable:$true] %s38
      %41 = dma.hbm_to_vmem [thread:$0]  %s2, 128, %s39, [#allocation5]
    $region13: #{tpu_custom_call.1} parent=1 // pred_fallthru
      _
    // Predicated region
    $region14: #{tpu_custom_call.1} parent=1 // pred_check
      _
    $region15: #{tpu_custom_call.1} parent=1 // pred_check_branch
      %43 = sbr.rel (0) target = $region17
    $region16: #{tpu_custom_call.1} parent=1 // pred_region
      %s45 = ssub.s32 128, 128
      %46 = vsyncadd [#allocation8], %s45
      %s48 = sshll.u32 [#allocation7], 4
      %s49 = int_to_ptr.vmem [resolvable:$true] %s48
      %51 = dma.hbm_to_vmem [thread:$0]  %s3, 128, %s49, [#allocation8]
    $region17: #{tpu_custom_call.1} parent=1 // pred_fallthru
      _
    // Predicated region
    $region18: #{tpu_custom_call.1} parent=1 // pred_check
      _
    $region19: #{tpu_custom_call.1} parent=1 // pred_check_branch
      %53 = sbr.rel (0) target = $region21
    $region20: #{tpu_custom_call.1} parent=1 // pred_region
      %54 = dma.done [#allocation3], 128
    $region21: #{tpu_custom_call.1} parent=1 // pred_fallthru
      _
    // Predicated region
    $region22: #{tpu_custom_call.1} parent=1 // pred_check
      _
    $region23: #{tpu_custom_call.1} parent=1 // pred_check_branch
      %56 = sbr.rel (0) target = $region25
    $region24: #{tpu_custom_call.1} parent=1 // pred_region
      %57 = dma.done [#allocation5], 128
    $region25: #{tpu_custom_call.1} parent=1 // pred_fallthru
      _
    // Predicated region
    $region26: #{tpu_custom_call.1} parent=1 // pred_check
      _
    $region27: #{tpu_custom_call.1} parent=1 // pred_check_branch
      %59 = sbr.rel (0) target = $region29
    $region28: #{tpu_custom_call.1} parent=1 // pred_region
      %60 = dma.done [#allocation5], 128
    $region29: #{tpu_custom_call.1} parent=1 // pred_fallthru
      _
    // Predicated region
    $region30: #{tpu_custom_call.1} parent=1 // pred_check
      _
    $region31: #{tpu_custom_call.1} parent=1 // pred_check_branch
      %62 = sbr.rel (0) target = $region33
    $region32: #{tpu_custom_call.1} parent=1 // pred_region
      %63 = dma.done [#allocation8], 128
    $region33: #{tpu_custom_call.1} parent=1 // pred_fallthru
      _
    %v64 = vld [vmem:[#allocation2] sm:$0xff]
    %v65 = vld [vmem:[#allocation4] sm:$0xff]
    %v66 = vld [vmem:[#allocation6] sm:$0xff]
    %v67 = vld [vmem:[#allocation7] sm:$0xff]
    %v68 = vmul.f32 %v64, 14.285714
    %v69 = vmul.f32 %v65, 14.285714
    %vm70 = vcmask 261120
    %v72 = vsel %vm70, %v68, 0
    %v75 = vsel %vm70, %v67, 0
    %77 = vmatprep.subr.mxu0 0.0
    %78 = vmatpush1.xpose.msra.mxu0 0.0
    %79 = vmatprep.subr.mxu0 0.0
    %80 = vmatpush1.xpose.msra.mxu0 0.0
    %81 = vmatprep.subr.mxu0 0.0
    %82 = vmatpush1.xpose.msra.mxu0 0.0
    %83 = vmatprep.subr.mxu0 0.0
    %84 = vmatpush1.xpose.msra.mxu0 0.0
    %85 = vmatprep.subr.mxu0 0.0
    %86 = vmatpush1.xpose.msra.mxu0 0.0
    %87 = vmatprep.subr.mxu0 0.0
    %88 = vmatpush1.xpose.msra.mxu0 0.0
    %89 = vmatprep.subr.mxu0 0.0
    %90 = vmatpush1.xpose.msra.mxu0 0.0
    %91 = vmatprep.subr.mxu0 0.0
    %92 = vmatpush1.xpose.msra.mxu0 0.0
    %93 = vmatprep.subr.mxu0 0.0
    %94 = vmatpush1.xpose.msra.mxu0 0.0
    %95 = vmatprep.subr.mxu0 0.0
    %96 = vmatpush1.xpose.msra.mxu0 0.0
    %97 = vmatprep.subr.mxu0 0.0
    %98 = vmatpush1.xpose.msra.mxu0 0.0
    %99 = vmatprep.subr.mxu0 0.0
    %100 = vmatpush1.xpose.msra.mxu0 0.0
    %101 = vmatprep.subr.mxu0 0.0
    %102 = vmatpush1.xpose.msra.mxu0 0.0
    %103 = vmatprep.subr.mxu0 0.0
    %104 = vmatpush1.xpose.msra.mxu0 0.0
    %105 = vmatprep.subr.mxu0 0.0
    %106 = vmatpush1.xpose.msra.mxu0 0.0
    %107 = vmatprep.subr.mxu0 0.0
    %108 = vmatpush1.xpose.msra.mxu0 %v75
    %109 = vmatprep.subr.mxu0 0.0
    %110 = vmatpush2.xpose.msra.mxu0 0.0
    %111 = vmatprep.subr.mxu0 0.0
    %112 = vmatpush2.xpose.msra.mxu0 0.0
    %113 = vmatprep.subr.mxu0 0.0
    %114 = vmatpush2.xpose.msra.mxu0 0.0
    %115 = vmatprep.subr.mxu0 0.0
    %116 = vmatpush2.xpose.msra.mxu0 0.0
    %117 = vmatprep.subr.mxu0 0.0
    %118 = vmatpush2.xpose.msra.mxu0 0.0
    %119 = vmatprep.subr.mxu0 0.0
    %120 = vmatpush2.xpose.msra.mxu0 0.0
    %121 = vmatprep.subr.mxu0 0.0
    %122 = vmatpush2.xpose.msra.mxu0 0.0
    %123 = vmatprep.subr.mxu0 0.0
    %124 = vmatpush2.xpose.msra.mxu0 0.0
    %125 = vmatprep.subr.mxu0 0.0
    %126 = vmatpush2.xpose.msra.mxu0 0.0
    %127 = vmatprep.subr.mxu0 0.0
    %128 = vmatpush2.xpose.msra.mxu0 0.0
    %129 = vmatprep.subr.mxu0 0.0
    %130 = vmatpush2.xpose.msra.mxu0 0.0
    %131 = vmatprep.subr.mxu0 0.0
    %132 = vmatpush2.xpose.msra.mxu0 0.0
    %133 = vmatprep.subr.mxu0 0.0
    %134 = vmatpush2.xpose.msra.mxu0 0.0
    %135 = vmatprep.subr.mxu0 0.0
    %136 = vmatpush2.xpose.msra.mxu0 0.0
    %137 = vmatprep.subr.mxu0 0.0
    %138 = vmatpush2.xpose.msra.mxu0 0.0
    %139 = vmatprep.subr.mxu0 0.0
    %140 = vmatpush2.xpose.msra.mxu0 0.0
    %141 = vmatprep.mubr.f32.mxu0 0.0
    %142 = vmatmul.mubr.f32.gmra.mxu0 %v72
    %v143 = vpop.f32.mrf.mxu0
    %v144 = vadd.f32 0.0, %v143
    %v145 = vpop.f32.mrf.mxu0
    %146 = vdwg.mxu0
    %v148 = vsel %vm70, %v69, 0
    %v151 = vsel %vm70, %v66, 0
    %153 = vmatprep.subr.mxu0 0.0
    %154 = vmatpush1.xpose.msra.mxu0 0.0
    %155 = vmatprep.subr.mxu0 0.0
    %156 = vmatpush1.xpose.msra.mxu0 0.0
    %157 = vmatprep.subr.mxu0 0.0
    %158 = vmatpush1.xpose.msra.mxu0 0.0
    %159 = vmatprep.subr.mxu0 0.0
    %160 = vmatpush1.xpose.msra.mxu0 0.0
    %161 = vmatprep.subr.mxu0 0.0
    %162 = vmatpush1.xpose.msra.mxu0 0.0
    %163 = vmatprep.subr.mxu0 0.0
    %164 = vmatpush1.xpose.msra.mxu0 0.0
    %165 = vmatprep.subr.mxu0 0.0
    %166 = vmatpush1.xpose.msra.mxu0 0.0
    %167 = vmatprep.subr.mxu0 0.0
    %168 = vmatpush1.xpose.msra.mxu0 0.0
    %169 = vmatprep.subr.mxu0 0.0
    %170 = vmatpush1.xpose.msra.mxu0 0.0
    %171 = vmatprep.subr.mxu0 0.0
    %172 = vmatpush1.xpose.msra.mxu0 0.0
    %173 = vmatprep.subr.mxu0 0.0
    %174 = vmatpush1.xpose.msra.mxu0 0.0
    %175 = vmatprep.subr.mxu0 0.0
    %176 = vmatpush1.xpose.msra.mxu0 0.0
    %177 = vmatprep.subr.mxu0 0.0
    %178 = vmatpush1.xpose.msra.mxu0 0.0
    %179 = vmatprep.subr.mxu0 0.0
    %180 = vmatpush1.xpose.msra.mxu0 0.0
    %181 = vmatprep.subr.mxu0 0.0
    %182 = vmatpush1.xpose.msra.mxu0 0.0
    %183 = vmatprep.subr.mxu0 0.0
    %184 = vmatpush1.xpose.msra.mxu0 %v151
    %185 = vmatprep.subr.mxu0 0.0
    %186 = vmatpush2.xpose.msra.mxu0 0.0
    %187 = vmatprep.subr.mxu0 0.0
    %188 = vmatpush2.xpose.msra.mxu0 0.0
    %189 = vmatprep.subr.mxu0 0.0
    %190 = vmatpush2.xpose.msra.mxu0 0.0
    %191 = vmatprep.subr.mxu0 0.0
    %192 = vmatpush2.xpose.msra.mxu0 0.0
    %193 = vmatprep.subr.mxu0 0.0
    %194 = vmatpush2.xpose.msra.mxu0 0.0
    %195 = vmatprep.subr.mxu0 0.0
    %196 = vmatpush2.xpose.msra.mxu0 0.0
    %197 = vmatprep.subr.mxu0 0.0
    %198 = vmatpush2.xpose.msra.mxu0 0.0
    %199 = vmatprep.subr.mxu0 0.0
    %200 = vmatpush2.xpose.msra.mxu0 0.0
    %201 = vmatprep.subr.mxu0 0.0
    %202 = vmatpush2.xpose.msra.mxu0 0.0
    %203 = vmatprep.subr.mxu0 0.0
    %204 = vmatpush2.xpose.msra.mxu0 0.0
    %205 = vmatprep.subr.mxu0 0.0
    %206 = vmatpush2.xpose.msra.mxu0 0.0
    %207 = vmatprep.subr.mxu0 0.0
    %208 = vmatpush2.xpose.msra.mxu0 0.0
    %209 = vmatprep.subr.mxu0 0.0
    %210 = vmatpush2.xpose.msra.mxu0 0.0
    %211 = vmatprep.subr.mxu0 0.0
    %212 = vmatpush2.xpose.msra.mxu0 0.0
    %213 = vmatprep.subr.mxu0 0.0
    %214 = vmatpush2.xpose.msra.mxu0 0.0
    %215 = vmatprep.subr.mxu0 0.0
    %216 = vmatpush2.xpose.msra.mxu0 0.0
    %217 = vmatprep.mubr.f32.mxu0 0.0
    %218 = vmatmul.mubr.f32.gmra.mxu0 %v148
    %v219 = vpop.f32.mrf.mxu0
    %v220 = vadd.f32 0.0, %v219
    %v221 = vpop.f32.mrf.mxu0
    %222 = vdwg.mxu0
    %v223 = vmul.f32 %v68, %v65
    %v224 = vsel %vm70, %v223, 0.0
    %225 = vadd.xlane.f32.xlu0 %v224
    %v226 = vpop.xlane.xlu0 %225
    %vm227 = vcmask 64512
    %v228 = vsel %vm227, %v144, -inf
    %229 = vmax.xlane.f32.xlu0 %v228
    %v230 = vpop.xlane.xlu0 %229
    %v231 = vsub.f32 %v144, %v230
    %v232 = vmul.f32 %v231, 1.442695
    %v233 = vpow.pop %v232
    %v234 = vsel %vm227, %v233, 0.0
    %235 = vadd.xlane.f32.xlu0 %v234
    %v236 = vpop.xlane.xlu0 %235
    %v237 = vlog2.pop %v236
    %v238 = vmul.f32 %v237, 0.6931472
    %v239 = vadd.f32 %v230, %v238
    %v240 = vsel %vm227, %v220, -inf
    %241 = vmax.xlane.f32.xlu0 %v240
    %v242 = vpop.xlane.xlu0 %241
    %v243 = vsub.f32 %v220, %v242
    %v244 = vmul.f32 %v243, 1.442695
    %v245 = vpow.pop %v244
    %v246 = vsel %vm227, %v245, 0.0
    %247 = vadd.xlane.f32.xlu0 %v246
    %v248 = vpop.xlane.xlu0 %247
    %v249 = vlog2.pop %v248
    %v250 = vmul.f32 %v249, 0.6931472
    %v251 = vadd.f32 %v242, %v250
    %v252 = vsub.f32 %v239, %v226
    %v253 = vsub.f32 %v251, %v226
    %v254 = vadd.f32 %v252, %v253
    %v255 = vmul.f32 %v254, 0.5
    %vm256 = vcmask 7168
    %257 = vst.msk [vmem:[%s4] sm:$0xff] %vm256, %v255
    // Predicated region
    $region34: #{tpu_custom_call.1} parent=1 // pred_check
      _
    $region35: #{tpu_custom_call.1} parent=1 // pred_check_branch
      %259 = sbr.rel (0) target = $region37
    $region36: #{tpu_custom_call.1} parent=1 // pred_region
      _
    $region37: #{tpu_custom_call.1} parent=1 // pred_fallthru
      _
    // Predicated region
    $region38: #{tpu_custom_call.1} parent=1 // pred_check
      _
    $region39: #{tpu_custom_call.1} parent=1 // pred_check_branch
      %261 = sbr.rel (0) target = $region41
    $region40: #{tpu_custom_call.1} parent=1 // pred_region
      _
    $region41: #{tpu_custom_call.1} parent=1 // pred_fallthru
      _
    %262 = vsyncpa [#allocation3], 1
    %263 = vsyncpa [#allocation5], 1
    %264 = vsyncpa [#allocation8], 1

</llo_original>
